<compile_context>
chip_gen: v7x
topology: tpu7x:2x2x1
jax: 0.10.0
libtpu: 0.0.40
codegen_flags: <defaults>
</compile_context>

<pallas_src>
import functools

import jax
import jax.numpy as jnp
from jax.experimental import pallas as pl
from jax.experimental.pallas import tpu as pltpu


# ----------------------------------------------------------------------------
# Fused Pallas kernel: all Dense layers, all selected channels, one atom tile
# per grid step.
# ----------------------------------------------------------------------------
def _fused_mlp_kernel(ch_ref, x_ref, *refs, layer_dims, residual, num_sel,
                      compute_dtype):
    """ch_ref : SMEM (C,) int32          -- scalar-prefetched channel ids
       x_ref  : VMEM (TM, C*fin0) f32    -- native atoms-major layout
       refs   : (w0, b0, w1, b1, ..., o_ref)
                w_i : VMEM (nch, fin_i, fout_i) compute_dtype (resident table)
                b_i : VMEM (nch, 1, fout_i) f32
       o_ref  : VMEM (TM, C*fout_last) f32"""
    o_ref = refs[-1]
    wb = refs[:-1]
    fin0 = layer_dims[0][0]

    x_blk = x_ref[...]                              # load the tile once (f32)

    outs = []
    for c in range(num_sel):                        # static unroll: C is small
        ch = ch_ref[c]                              # dynamic channel id (scalar)
        h = x_blk[:, c * fin0:(c + 1) * fin0]       # (TM, fin0) f32
        for li, (fin, fout) in enumerate(layer_dims):
            w = wb[2 * li][ch]                      # (fin, fout), dyn. leading load
            b = wb[2 * li + 1][ch]                  # (1, fout) f32
            # Native MXU feed: LHS K on lanes, RHS K on sublanes, f32 accum.
            y = jnp.dot(h.astype(compute_dtype), w,
                        preferred_element_type=jnp.float32)
            y = jnp.tanh(y + b)                     # f32 bias add + EUP tanh
            if residual:
                if fout == fin:
                    y = y + h
                elif fout == 2 * fin:
                    # "cat([x, x], -1)" residual: small lane-axis concat.
                    y = y + jnp.concatenate([h, h], axis=1)
                # else: unreachable -- wrapper raises like the PyTorch module.
            h = y
        outs.append(h)

    out = outs[0] if num_sel == 1 else jnp.concatenate(outs, axis=1)
    o_ref[...] = out.astype(o_ref.dtype)            # single lane-dense store


def _round_up(x, m):
    return (x + m - 1) // m * m


# ----------------------------------------------------------------------------
# AtomFitNet wrapper (glue in plain JAX; no HBM relayout passes).
# ----------------------------------------------------------------------------
def atom_fit_net_forward(x, channels, params, *, resnet_dt,
                         compute_dtype=jnp.bfloat16, atom_tile=2048):
    """x: (natoms, C, network_size[0]) f32, channels: (B, C) int."""
    ch = channels[0].astype(jnp.int32)              # matches `channels[0]`
    natoms, C, fin0 = x.shape

    # Static layer geometry (same residual-shape check as the PyTorch module).
    layer_dims = []
    fin = fin0
    for w, _ in params:
        fout = w.shape[1]
        if resnet_dt and fout != fin and fout != 2 * fin:
            raise NotImplementedError("Not implemented")
        layer_dims.append((fin, fout))
        fin = fout
    fout_last = layer_dims[-1][1]
    num_layers = len(layer_dims)

    # Weight tables pre-transposed ONCE to (nch, fin, fout) in the compute
    # dtype (tables are tiny); biases stay f32, shaped (nch, 1, fout) so a
    # channel slice sublane-broadcasts against (TM, fout).
    # TODO(synk): gate this resident-VMEM table strategy on nch (gathered
    #             per-channel BlockSpecs for very large type counts).
    flat_params = []
    for (w, b), (fi, fo) in zip(params, layer_dims):
        nch = w.shape[0]
        flat_params.append(jnp.transpose(w, (0, 2, 1)).astype(compute_dtype))
        flat_params.append(b.reshape(nch, 1, fo).astype(jnp.float32))

    # Native-layout 2-D views: reshapes of contiguous trailing dims are free.
    x2d = x.reshape(natoms, C * fin0)
    m_pad = _round_up(natoms, 8)                    # sublane alignment only
    if m_pad != natoms:                             # no-op at typical natoms
        x2d = jnp.pad(x2d, ((0, m_pad - natoms), (0, 0)))

    tm = min(_round_up(atom_tile, 8), m_pad)
    grid_m = (m_pad + tm - 1) // tm                 # partial last block masked by Pallas

    kernel = functools.partial(
        _fused_mlp_kernel, layer_dims=tuple(layer_dims), residual=resnet_dt,
        num_sel=C, compute_dtype=compute_dtype)

    # Resident (untiled) VMEM tables for every layer's weight & bias.
    table_spec = pl.BlockSpec(memory_space=pltpu.MemorySpace.VMEM)

    out2d = pl.pallas_call(
        kernel,
        out_shape=jax.ShapeDtypeStruct((m_pad, C * fout_last), x.dtype),
        grid_spec=pltpu.PrefetchScalarGridSpec(
            num_scalar_prefetch=1,
            grid=(grid_m,),
            in_specs=[pl.BlockSpec((tm, C * fin0), lambda m, ch_ref: (m, 0))]
                    + [table_spec] * (2 * num_layers),
            out_specs=pl.BlockSpec((tm, C * fout_last), lambda m, ch_ref: (m, 0)),
        ),
        # Atom tiles are independent.  TODO(synk): pltpu.CORE_PARALLEL on v7x
        # if profiling shows a TensorCore idle.
        compiler_params=pltpu.CompilerParams(dimension_semantics=("parallel",)),
    )(ch, x2d, *flat_params)

    return out2d[:natoms].reshape(natoms, C, fout_last)


# ----------------------------------------------------------------------------
# Pure-JAX reference for verification.
# ----------------------------------------------------------------------------
def atom_fit_net_reference(x, channels, params, *, resnet_dt):
    ch = channels[0].astype(jnp.int32)
    h = x
    for w, b in params:
        wg = w[ch]                                    # (C, fout, fin)
        bg = b[ch]                                    # (C, fout)
        y = jnp.einsum('mcf,cof->mco', h, wg) + bg[None]
        y = jnp.tanh(y)
        if resnet_dt:
            if y.shape[2] == h.shape[2]:
                y = y + h
            elif y.shape[2] == 2 * h.shape[2]:
                y = y + jnp.concatenate([h, h], axis=2)
        h = y
    return h


def init_params(key, num_channels, network_size):
    """Deterministic init mirroring the PyTorch shapes (kaiming-style bounds)."""
    params = []
    for i in range(len(network_size) - 1):
        fin, fout = network_size[i], network_size[i + 1]
        key, kw, kb = jax.random.split(key, 3)
        bound = 1.0 / (fin ** 0.5)
        w = jax.random.uniform(kw, (num_channels, fout, fin),
                               jnp.float32, -bound, bound)
        b = jax.random.uniform(kb, (num_channels, fout),
                               jnp.float32, -bound, bound)
        params.append((w, b))
    return params


if __name__ == "__main__":
    # Small, module-consistent shapes.
    num_channels = 4                 # number of atom types in the param tables
    network_size = [32, 64, 64]      # fin -> 2*fin (cat residual) -> same (residual)
    resnet_dt = True
    natoms, C = 16, 2                # C = number of selected channels

    key = jax.random.PRNGKey(0)
    key, kx = jax.random.split(key)
    x = jax.random.normal(kx, (natoms, C, network_size[0]), jnp.float32)
    channels = jnp.array([[0, 2]], dtype=jnp.int32)   # (B, C); forward uses channels[0]

    params = init_params(key, num_channels, network_size)
    ref = atom_fit_net_reference(x, channels, params, resnet_dt=resnet_dt)

    # Structural exactness: f32-compute path must match the reference tightly.
    out_f32 = atom_fit_net_forward(x, channels, params, resnet_dt=resnet_dt,
                                   compute_dtype=jnp.float32)
    out_f32 = jax.block_until_ready(out_f32)
    assert out_f32.shape == (natoms, C, network_size[-1])
    assert jnp.allclose(out_f32, ref, atol=2e-5, rtol=2e-5)

    # Production path: bf16 MXU inputs, f32 accumulation / tanh / residual.
    out = atom_fit_net_forward(x, channels, params, resnet_dt=resnet_dt)
    out = jax.block_until_ready(out)
    assert out.shape == (natoms, C, network_size[-1])
    assert jnp.allclose(out, ref, atol=5e-2, rtol=5e-2)

    print("KERNEL_OK")
</pallas_src>

<mosaic_0001>
module attributes {stable_mosaic.version = 11 : i64} {
  func.func @_fused_mlp_kernel(%arg0: i32, %arg1: memref<2xi32, #tpu.memory_space<smem>>, %arg2: memref<16x64xf32, #tpu.memory_space<vmem>>, %arg3: memref<4x32x64xf32, #tpu.memory_space<vmem>>, %arg4: memref<4x1x64xf32, #tpu.memory_space<vmem>>, %arg5: memref<4x64x64xf32, #tpu.memory_space<vmem>>, %arg6: memref<4x1x64xf32, #tpu.memory_space<vmem>>, %arg7: memref<16x128xf32, #tpu.memory_space<vmem>>) attributes {dimension_semantics = [#tpu.dimension_semantics<parallel>], iteration_bounds = array<i64: 1>, scalar_prefetch = 1 : i64, scratch_operands = 0 : i64, tpu.core_type = #tpu.core_type<tc>, window_params = [{transform_indices = @transform_0, window_bounds = array<i64: 16, 64>}, {pipeline_mode = #tpu.pipeline_mode<synchronous>, transform_indices = @transform_1, window_bounds = array<i64: 4, 32, 64>}, {pipeline_mode = #tpu.pipeline_mode<synchronous>, transform_indices = @transform_2, window_bounds = array<i64: 4, 1, 64>}, {pipeline_mode = #tpu.pipeline_mode<synchronous>, transform_indices = @transform_3, window_bounds = array<i64: 4, 64, 64>}, {pipeline_mode = #tpu.pipeline_mode<synchronous>, transform_indices = @transform_4, window_bounds = array<i64: 4, 1, 64>}, {transform_indices = @transform_5, window_bounds = array<i64: 16, 128>}]} {
    %c0 = arith.constant 0 : index
    %c0_0 = arith.constant 0 : index
    %0 = vector.load %arg2[%c0, %c0_0] : memref<16x64xf32, #tpu.memory_space<vmem>>, vector<16x64xf32>
    %c0_1 = arith.constant 0 : index
    %1 = memref.load %arg1[%c0_1] : memref<2xi32, #tpu.memory_space<smem>>
    %2 = vector.extract_strided_slice %0 {offsets = [0, 0], sizes = [16, 32], strides = [1, 1]} : vector<16x64xf32> to vector<16x32xf32>
    %3 = arith.index_cast %1 : i32 to index
    %c0_2 = arith.constant 0 : index
    %c0_3 = arith.constant 0 : index
    %4 = vector.load %arg3[%3, %c0_2, %c0_3] : memref<4x32x64xf32, #tpu.memory_space<vmem>>, vector<1x32x64xf32>
    %5 = vector.shape_cast %4 : vector<1x32x64xf32> to vector<32x64xf32>
    %6 = arith.index_cast %1 : i32 to index
    %c0_4 = arith.constant 0 : index
    %c0_5 = arith.constant 0 : index
    %7 = vector.load %arg4[%6, %c0_4, %c0_5] : memref<4x1x64xf32, #tpu.memory_space<vmem>>, vector<1x1x64xf32>
    %8 = vector.shape_cast %7 : vector<1x1x64xf32> to vector<1x64xf32>
    %cst = arith.constant dense<0.000000e+00> : vector<16x64xf32>
    %9 = tpu.matmul %2, %5, %cst {dimension_numbers = #tpu.dot_dimension_numbers<[1], [0], [0], [1], [0, 0, 1, 1], [], []>} : vector<16x32xf32>, vector<32x64xf32>, vector<16x64xf32> -> vector<16x64xf32>
    %10 = vector.broadcast %8 : vector<1x64xf32> to vector<16x64xf32>
    %11 = arith.addf %9, %10 : vector<16x64xf32>
    %12 = math.tanh %11 : vector<16x64xf32>
    %13 = tpu.concatenate %2, %2 in 1 : vector<16x32xf32>, vector<16x32xf32> -> vector<16x64xf32>
    %14 = arith.addf %12, %13 : vector<16x64xf32>
    %15 = arith.index_cast %1 : i32 to index
    %c0_6 = arith.constant 0 : index
    %c0_7 = arith.constant 0 : index
    %16 = vector.load %arg5[%15, %c0_6, %c0_7] : memref<4x64x64xf32, #tpu.memory_space<vmem>>, vector<1x64x64xf32>
    %17 = vector.shape_cast %16 : vector<1x64x64xf32> to vector<64x64xf32>
    %18 = arith.index_cast %1 : i32 to index
    %c0_8 = arith.constant 0 : index
    %c0_9 = arith.constant 0 : index
    %19 = vector.load %arg6[%18, %c0_8, %c0_9] : memref<4x1x64xf32, #tpu.memory_space<vmem>>, vector<1x1x64xf32>
    %20 = vector.shape_cast %19 : vector<1x1x64xf32> to vector<1x64xf32>
    %cst_10 = arith.constant dense<0.000000e+00> : vector<16x64xf32>
    %21 = tpu.matmul %14, %17, %cst_10 {dimension_numbers = #tpu.dot_dimension_numbers<[1], [0], [0], [1], [0, 0, 1, 1], [], []>} : vector<16x64xf32>, vector<64x64xf32>, vector<16x64xf32> -> vector<16x64xf32>
    %22 = vector.broadcast %20 : vector<1x64xf32> to vector<16x64xf32>
    %23 = arith.addf %21, %22 : vector<16x64xf32>
    %24 = math.tanh %23 : vector<16x64xf32>
    %25 = arith.addf %24, %14 : vector<16x64xf32>
    %c1 = arith.constant 1 : index
    %26 = memref.load %arg1[%c1] : memref<2xi32, #tpu.memory_space<smem>>
    %27 = vector.extract_strided_slice %0 {offsets = [0, 32], sizes = [16, 32], strides = [1, 1]} : vector<16x64xf32> to vector<16x32xf32>
    %28 = arith.index_cast %26 : i32 to index
    %c0_11 = arith.constant 0 : index
    %c0_12 = arith.constant 0 : index
    %29 = vector.load %arg3[%28, %c0_11, %c0_12] : memref<4x32x64xf32, #tpu.memory_space<vmem>>, vector<1x32x64xf32>
    %30 = vector.shape_cast %29 : vector<1x32x64xf32> to vector<32x64xf32>
    %31 = arith.index_cast %26 : i32 to index
    %c0_13 = arith.constant 0 : index
    %c0_14 = arith.constant 0 : index
    %32 = vector.load %arg4[%31, %c0_13, %c0_14] : memref<4x1x64xf32, #tpu.memory_space<vmem>>, vector<1x1x64xf32>
    %33 = vector.shape_cast %32 : vector<1x1x64xf32> to vector<1x64xf32>
    %cst_15 = arith.constant dense<0.000000e+00> : vector<16x64xf32>
    %34 = tpu.matmul %27, %30, %cst_15 {dimension_numbers = #tpu.dot_dimension_numbers<[1], [0], [0], [1], [0, 0, 1, 1], [], []>} : vector<16x32xf32>, vector<32x64xf32>, vector<16x64xf32> -> vector<16x64xf32>
    %35 = vector.broadcast %33 : vector<1x64xf32> to vector<16x64xf32>
    %36 = arith.addf %34, %35 : vector<16x64xf32>
    %37 = math.tanh %36 : vector<16x64xf32>
    %38 = tpu.concatenate %27, %27 in 1 : vector<16x32xf32>, vector<16x32xf32> -> vector<16x64xf32>
    %39 = arith.addf %37, %38 : vector<16x64xf32>
    %40 = arith.index_cast %26 : i32 to index
    %c0_16 = arith.constant 0 : index
    %c0_17 = arith.constant 0 : index
    %41 = vector.load %arg5[%40, %c0_16, %c0_17] : memref<4x64x64xf32, #tpu.memory_space<vmem>>, vector<1x64x64xf32>
    %42 = vector.shape_cast %41 : vector<1x64x64xf32> to vector<64x64xf32>
    %43 = arith.index_cast %26 : i32 to index
    %c0_18 = arith.constant 0 : index
    %c0_19 = arith.constant 0 : index
    %44 = vector.load %arg6[%43, %c0_18, %c0_19] : memref<4x1x64xf32, #tpu.memory_space<vmem>>, vector<1x1x64xf32>
    %45 = vector.shape_cast %44 : vector<1x1x64xf32> to vector<1x64xf32>
    %cst_20 = arith.constant dense<0.000000e+00> : vector<16x64xf32>
    %46 = tpu.matmul %39, %42, %cst_20 {dimension_numbers = #tpu.dot_dimension_numbers<[1], [0], [0], [1], [0, 0, 1, 1], [], []>} : vector<16x64xf32>, vector<64x64xf32>, vector<16x64xf32> -> vector<16x64xf32>
    %47 = vector.broadcast %45 : vector<1x64xf32> to vector<16x64xf32>
    %48 = arith.addf %46, %47 : vector<16x64xf32>
    %49 = math.tanh %48 : vector<16x64xf32>
    %50 = arith.addf %49, %39 : vector<16x64xf32>
    %51 = tpu.concatenate %25, %50 in 1 : vector<16x64xf32>, vector<16x64xf32> -> vector<16x128xf32>
    %c0_21 = arith.constant 0 : index
    %c0_22 = arith.constant 0 : index
    %52 = vector.load %arg7[%c0_21, %c0_22] : memref<16x128xf32, #tpu.memory_space<vmem>>, vector<16x128xf32>
    tpu.vector_store %arg7[%c0_21, %c0_22], %51 {strides = array<i32>} : memref<16x128xf32, #tpu.memory_space<vmem>>, vector<16x128xf32>,
    return
  }
  func.func @transform_0(%arg0: i32, %arg1: memref<2xi32, #tpu.memory_space<smem>>) -> (i32, i32) {
    %c0_i32 = arith.constant 0 : i32
    %c0_i32_0 = arith.constant 0 : i32
    return %arg0, %c0_i32 : i32, i32
  }
  func.func @transform_1(%arg0: i32, %arg1: memref<2xi32, #tpu.memory_space<smem>>) -> (i32, i32, i32) {
    %c0_i32 = arith.constant 0 : i32
    %c0_i32_0 = arith.constant 0 : i32
    %c0_i32_1 = arith.constant 0 : i32
    %c0_i32_2 = arith.constant 0 : i32
    return %c0_i32, %c0_i32_0, %c0_i32_1 : i32, i32, i32
  }
  func.func @transform_2(%arg0: i32, %arg1: memref<2xi32, #tpu.memory_space<smem>>) -> (i32, i32, i32) {
    %c0_i32 = arith.constant 0 : i32
    %c0_i32_0 = arith.constant 0 : i32
    %c0_i32_1 = arith.constant 0 : i32
    %c0_i32_2 = arith.constant 0 : i32
    return %c0_i32, %c0_i32_0, %c0_i32_1 : i32, i32, i32
  }
  func.func @transform_3(%arg0: i32, %arg1: memref<2xi32, #tpu.memory_space<smem>>) -> (i32, i32, i32) {
    %c0_i32 = arith.constant 0 : i32
    %c0_i32_0 = arith.constant 0 : i32
    %c0_i32_1 = arith.constant 0 : i32
    %c0_i32_2 = arith.constant 0 : i32
    return %c0_i32, %c0_i32_0, %c0_i32_1 : i32, i32, i32
  }
  func.func @transform_4(%arg0: i32, %arg1: memref<2xi32, #tpu.memory_space<smem>>) -> (i32, i32, i32) {
    %c0_i32 = arith.constant 0 : i32
    %c0_i32_0 = arith.constant 0 : i32
    %c0_i32_1 = arith.constant 0 : i32
    %c0_i32_2 = arith.constant 0 : i32
    return %c0_i32, %c0_i32_0, %c0_i32_1 : i32, i32, i32
  }
  func.func @transform_5(%arg0: i32, %arg1: memref<2xi32, #tpu.memory_space<smem>>) -> (i32, i32) {
    %c0_i32 = arith.constant 0 : i32
    %c0_i32_0 = arith.constant 0 : i32
    return %arg0, %c0_i32 : i32, i32
  }
}

</mosaic_0001>

<llo_original>
// kernel: tpu_custom_call.1
$region0: #{tpu_custom_call.1}
  #allocation0 [shape = 'u32[]', space=smem, size = 0x4, offset = 0x4, fixed_abs, tag = 'smem constant byte address 0x4 - core index']
  #allocation1 [shape = 'u32[144,128]{1,0:T(1,128)}', space=vmem, size = 0x12000, scoped, tag = 'internal scratch']
  #allocation2 [shape = 's32[1]{0}', space=sflag, size = 0x4, scoped, tag = 'scoped memory for tpu_custom_call.1']
  #allocation3 [shape = 'u8[512]{0}', space=smem, size = 0x200, scoped, tag = 'prefetched SMEM operand 0']
  %s0 = inlined_call_operand.hbm [shape: s32[2], index: 0, kind: input, shape index: {}]
  %s1 = inlined_call_operand.hbm [shape: f32[16,64], index: 1, kind: input, shape index: {}]
  %s2 = inlined_call_operand.hbm [shape: f32[4,32,64], index: 2, kind: input, shape index: {}]
  %s3 = inlined_call_operand.vmem [shape: f32[4,1,64], index: 3, kind: input, shape index: {}]
  %s4 = inlined_call_operand.hbm [shape: f32[4,64,64], index: 4, kind: input, shape index: {}]
  %s5 = inlined_call_operand.vmem [shape: f32[4,1,64], index: 5, kind: input, shape index: {}]
  %s6 = inlined_call_operand.hbm [shape: f32[16,128], index: 6, kind: output, shape index: {}]
  %s7 = sld [smem:[#allocation0]]
  $region42: #{tpu_custom_call.1} parent=0
    _
  %s9 = ssub.s32 1, %s7
  %s10 = scalar_select 0, %s9, %s7
  %12 = dma.hbm_to_smem %s0, 16, [#allocation3], [#allocation2]
  %13 = dma.done [#allocation2], 16
  %14 = sfence
  $region1: #{tpu_custom_call.1} parent=0
    #allocation4 [shape = 'u8[8192]{0}', space=vmem, size = 0x2000, scoped, tag = 'input window, operand 1, single buffered']
    #allocation5 [shape = 's32[1]{0}', space=sflag, size = 0x4, scoped, tag = 'scoped memory for tpu_custom_call.1']
    #allocation6 [shape = 's32[1]{0}', space=sflag, size = 0x4, scoped, tag = 'scoped memory for tpu_custom_call.1']
    #allocation7 [shape = 'u8[65536]{0}', space=vmem, size = 0x10000, scoped, tag = 'input window, operand 2, single buffered']
    #allocation8 [shape = 's32[1]{0}', space=sflag, size = 0x4, scoped, tag = 'scoped memory for tpu_custom_call.1']
    #allocation9 [shape = 'u8[131072]{0}', space=vmem, size = 0x20000, scoped, tag = 'input window, operand 4, single buffered']
    #allocation10 [shape = 'u8[8192]{0}', space=vmem, size = 0x2000, scoped, tag = 'output window, operand 0, single buffered']
    %15 = vsyncpa [#allocation5], 0
    %16 = vsyncpa [#allocation8], 0
    %17 = vsyncpa [#allocation6], 0
    // Predicated region
    $region2: #{tpu_custom_call.1} parent=1 // pred_check
      _
    $region3: #{tpu_custom_call.1} parent=1 // pred_check_branch
      %19 = sbr.rel (0) target = $region5
    $region4: #{tpu_custom_call.1} parent=1 // pred_region
      %s21 = ssub.s32 256, 256
      %22 = vsyncadd [#allocation5], %s21
      %s23 = sshll.u32 [#allocation4], 4
      %s24 = int_to_ptr.vmem [resolvable:$true] %s23
      %29 = dma.hbm_to_vmem [thread:$0]  %s1, 256, %s24, [#allocation5], 128, 128, 8
    $region5: #{tpu_custom_call.1} parent=1 // pred_fallthru
      _
    // Predicated region
    $region6: #{tpu_custom_call.1} parent=1 // pred_check
      _
    $region7: #{tpu_custom_call.1} parent=1 // pred_check_branch
      %31 = sbr.rel (0) target = $region9
    $region8: #{tpu_custom_call.1} parent=1 // pred_region
      %s33 = ssub.s32 2048, 2048
      %34 = vsyncadd [#allocation8], %s33
      %s35 = sshll.u32 [#allocation7], 4
      %s36 = int_to_ptr.vmem [resolvable:$true] %s35
      %41 = dma.hbm_to_vmem [thread:$0]  %s2, 2048, %s36, [#allocation8], 128, 128, 8
    $region9: #{tpu_custom_call.1} parent=1 // pred_fallthru
      _
    // Predicated region
    $region10: #{tpu_custom_call.1} parent=1 // pred_check
      _
    $region11: #{tpu_custom_call.1} parent=1 // pred_check_branch
      %43 = sbr.rel (0) target = $region13
    $region12: #{tpu_custom_call.1} parent=1 // pred_region
      _
    $region13: #{tpu_custom_call.1} parent=1 // pred_fallthru
      _
    // Predicated region
    $region14: #{tpu_custom_call.1} parent=1 // pred_check
      _
    $region15: #{tpu_custom_call.1} parent=1 // pred_check_branch
      %45 = sbr.rel (0) target = $region17
    $region16: #{tpu_custom_call.1} parent=1 // pred_region
      %s47 = ssub.s32 4096, 4096
      %48 = vsyncadd [#allocation8], %s47
      %s49 = sshll.u32 [#allocation9], 4
      %s50 = int_to_ptr.vmem [resolvable:$true] %s49
      %55 = dma.hbm_to_vmem [thread:$0]  %s4, 4096, %s50, [#allocation8], 128, 128, 8
    $region17: #{tpu_custom_call.1} parent=1 // pred_fallthru
      _
    // Predicated region
    $region18: #{tpu_custom_call.1} parent=1 // pred_check
      _
    $region19: #{tpu_custom_call.1} parent=1 // pred_check_branch
      %57 = sbr.rel (0) target = $region21
    $region20: #{tpu_custom_call.1} parent=1 // pred_region
      _
    $region21: #{tpu_custom_call.1} parent=1 // pred_fallthru
      _
    // Predicated region
    $region22: #{tpu_custom_call.1} parent=1 // pred_check
      _
    $region23: #{tpu_custom_call.1} parent=1 // pred_check_branch
      %59 = sbr.rel (0) target = $region25
    $region24: #{tpu_custom_call.1} parent=1 // pred_region
      %60 = dma.done [#allocation5], 256
    $region25: #{tpu_custom_call.1} parent=1 // pred_fallthru
      _
    // Predicated region
    $region26: #{tpu_custom_call.1} parent=1 // pred_check
      _
    $region27: #{tpu_custom_call.1} parent=1 // pred_check_branch
      %62 = sbr.rel (0) target = $region29
    $region28: #{tpu_custom_call.1} parent=1 // pred_region
      %63 = dma.done [#allocation8], 2048
    $region29: #{tpu_custom_call.1} parent=1 // pred_fallthru
      _
    // Predicated region
    $region30: #{tpu_custom_call.1} parent=1 // pred_check
      _
    $region31: #{tpu_custom_call.1} parent=1 // pred_check_branch
      %65 = sbr.rel (0) target = $region33
    $region32: #{tpu_custom_call.1} parent=1 // pred_region
      %66 = dma.done [#allocation8], 4096
    $region33: #{tpu_custom_call.1} parent=1 // pred_fallthru
      _
    %v67 = vld [vmem:[#allocation4] sm:$0xff]
    %v68 = vld [vmem:[#allocation4 + $0x8] sm:$0xff]
    %s69 = sld [smem:[#allocation3]]
    %s70 = smul.u32 %s69, 32
    %s71 = scalar_lea.vmem [#allocation7], %s70
    %v72 = vld [vmem:[%s71] sm:$0xff]
    %v73 = vld [vmem:[%s71 + $0x8] sm:$0xff]
    %v74 = vld [vmem:[%s71 + $0x10] sm:$0xff]
    %v75 = vld [vmem:[%s71 + $0x18] sm:$0xff]
    %s76 = scalar_lea.vmem %s3, %s69
    %v77 = vld [vmem:[%s76] sm:$0x1]
    %v79 = vlaneseq
    %v80 = vshrl.u32 %v79, 7
    %v81 = vsub.s32 0, %v80
    %v82 = vrot.slane %v77, %v81
    %vm84 = vcmask 261120
    %v86 = vsel %vm84, %v67, 0
    %v89 = vsel %vm84, %v68, 0
    %91 = vmatprep.subr.mxu0 0.0
    %92 = vmatpush1.msra.mxu0 %v72
    %93 = vmatprep.subr.mxu0 0.0
    %94 = vmatpush1.msra.mxu0 %v73
    %95 = vmatprep.subr.mxu0 0.0
    %96 = vmatpush1.msra.mxu0 %v74
    %97 = vmatprep.subr.mxu0 0.0
    %98 = vmatpush1.msra.mxu0 %v75
    %99 = vmatprep.subr.mxu0 0.0
    %100 = vmatpush1.msra.mxu0 0.0
    %101 = vmatprep.subr.mxu0 0.0
    %102 = vmatpush1.msra.mxu0 0.0
    %103 = vmatprep.subr.mxu0 0.0
    %104 = vmatpush1.msra.mxu0 0.0
    %105 = vmatprep.subr.mxu0 0.0
    %106 = vmatpush1.msra.mxu0 0.0
    %107 = vmatprep.subr.mxu0 0.0
    %108 = vmatpush1.msra.mxu0 0.0
    %109 = vmatprep.subr.mxu0 0.0
    %110 = vmatpush1.msra.mxu0 0.0
    %111 = vmatprep.subr.mxu0 0.0
    %112 = vmatpush1.msra.mxu0 0.0
    %113 = vmatprep.subr.mxu0 0.0
    %114 = vmatpush1.msra.mxu0 0.0
    %115 = vmatprep.subr.mxu0 0.0
    %116 = vmatpush1.msra.mxu0 0.0
    %117 = vmatprep.subr.mxu0 0.0
    %118 = vmatpush1.msra.mxu0 0.0
    %119 = vmatprep.subr.mxu0 0.0
    %120 = vmatpush1.msra.mxu0 0.0
    %121 = vmatprep.subr.mxu0 0.0
    %122 = vmatpush1.msra.mxu0 0.0
    %123 = vmatprep.subr.mxu0 0.0
    %124 = vmatpush1.msra.mxu0 0.0
    %125 = vmatprep.subr.mxu0 0.0
    %126 = vmatpush1.msra.mxu0 0.0
    %127 = vmatprep.subr.mxu0 0.0
    %128 = vmatpush1.msra.mxu0 0.0
    %129 = vmatprep.subr.mxu0 0.0
    %130 = vmatpush1.msra.mxu0 0.0
    %131 = vmatprep.subr.mxu0 0.0
    %132 = vmatpush1.msra.mxu0 0.0
    %133 = vmatprep.subr.mxu0 0.0
    %134 = vmatpush1.msra.mxu0 0.0
    %135 = vmatprep.subr.mxu0 0.0
    %136 = vmatpush1.msra.mxu0 0.0
    %137 = vmatprep.subr.mxu0 0.0
    %138 = vmatpush1.msra.mxu0 0.0
    %139 = vmatprep.subr.mxu0 0.0
    %140 = vmatpush1.msra.mxu0 0.0
    %141 = vmatprep.subr.mxu0 0.0
    %142 = vmatpush1.msra.mxu0 0.0
    %143 = vmatprep.subr.mxu0 0.0
    %144 = vmatpush1.msra.mxu0 0.0
    %145 = vmatprep.subr.mxu0 0.0
    %146 = vmatpush1.msra.mxu0 0.0
    %147 = vmatprep.subr.mxu0 0.0
    %148 = vmatpush1.msra.mxu0 0.0
    %149 = vmatprep.subr.mxu0 0.0
    %150 = vmatpush1.msra.mxu0 0.0
    %151 = vmatprep.subr.mxu0 0.0
    %152 = vmatpush1.msra.mxu0 0.0
    %153 = vmatprep.subr.mxu0 0.0
    %154 = vmatpush1.msra.mxu0 0.0
    %155 = vmatprep.mubr.f32.mxu0 0.0
    %156 = vmatmul.mubr.f32.gmra.mrb[0].mxu0 %v86
    %v157 = vpop.f32.mrb[0].mxu0
    %v158 = vadd.f32 %v82, %v157
    %v159 = vpop.f32.mrb[0].mxu0
    %160 = vmatprep.mubr.f32.mxu0 0.0
    %161 = vmatmul.mubr.f32.gmra.mrb[0].mxu0 %v89
    %v162 = vpop.f32.mrb[0].mxu0
    %v163 = vadd.f32 %v82, %v162
    %v164 = vpop.f32.mrb[0].mxu0
    %165 = vdwg.mxu0
    %v166 = vtanh.pop %v158
    %v167 = vtanh.pop %v163
    %168 = vrot.lane.b32.xlu0 %v67, 32
    %v169 = vpop.permute.xlu0 %168
    %170 = vrot.lane.b32.xlu0 %v68, 32
    %v171 = vpop.permute.xlu0 %170
    %v174 = vsel %vm84, %v67, %v169
    %v175 = vsel %vm84, %v68, %v171
    %v176 = vadd.f32 %v166, %v174
    %v177 = vadd.f32 %v167, %v175
    %s178 = smul.u32 %s69, 64
    %s179 = scalar_lea.vmem [#allocation9], %s178
    %v180 = vld [vmem:[%s179] sm:$0xff]
    %v181 = vld [vmem:[%s179 + $0x8] sm:$0xff]
    %v182 = vld [vmem:[%s179 + $0x10] sm:$0xff]
    %v183 = vld [vmem:[%s179 + $0x18] sm:$0xff]
    %v184 = vld [vmem:[%s179 + $0x20] sm:$0xff]
    %v185 = vld [vmem:[%s179 + $0x28] sm:$0xff]
    %v186 = vld [vmem:[%s179 + $0x30] sm:$0xff]
    %v187 = vld [vmem:[%s179 + $0x38] sm:$0xff]
    %s188 = scalar_lea.vmem %s5, %s69
    %v189 = vld [vmem:[%s188] sm:$0x1]
    %v191 = vlaneseq
    %v192 = vshrl.u32 %v191, 7
    %v193 = vsub.s32 0, %v192
    %v194 = vrot.slane %v189, %v193
    %vm196 = vcmask 523264
    %v198 = vsel %vm196, %v176, 0
    %v201 = vsel %vm196, %v177, 0
    %203 = vmatprep.subr.mxu0 0.0
    %204 = vmatpush1.msra.mxu0 %v180
    %205 = vmatprep.subr.mxu0 0.0
    %206 = vmatpush1.msra.mxu0 %v181
    %207 = vmatprep.subr.mxu0 0.0
    %208 = vmatpush1.msra.mxu0 %v182
    %209 = vmatprep.subr.mxu0 0.0
    %210 = vmatpush1.msra.mxu0 %v183
    %211 = vmatprep.subr.mxu0 0.0
    %212 = vmatpush1.msra.mxu0 %v184
    %213 = vmatprep.subr.mxu0 0.0
    %214 = vmatpush1.msra.mxu0 %v185
    %215 = vmatprep.subr.mxu0 0.0
    %216 = vmatpush1.msra.mxu0 %v186
    %217 = vmatprep.subr.mxu0 0.0
    %218 = vmatpush1.msra.mxu0 %v187
    %219 = vmatprep.subr.mxu0 0.0
    %220 = vmatpush1.msra.mxu0 0.0
    %221 = vmatprep.subr.mxu0 0.0
    %222 = vmatpush1.msra.mxu0 0.0
    %223 = vmatprep.subr.mxu0 0.0
    %224 = vmatpush1.msra.mxu0 0.0
    %225 = vmatprep.subr.mxu0 0.0
    %226 = vmatpush1.msra.mxu0 0.0
    %227 = vmatprep.subr.mxu0 0.0
    %228 = vmatpush1.msra.mxu0 0.0
    %229 = vmatprep.subr.mxu0 0.0
    %230 = vmatpush1.msra.mxu0 0.0
    %231 = vmatprep.subr.mxu0 0.0
    %232 = vmatpush1.msra.mxu0 0.0
    %233 = vmatprep.subr.mxu0 0.0
    %234 = vmatpush1.msra.mxu0 0.0
    %235 = vmatprep.subr.mxu0 0.0
    %236 = vmatpush1.msra.mxu0 0.0
    %237 = vmatprep.subr.mxu0 0.0
    %238 = vmatpush1.msra.mxu0 0.0
    %239 = vmatprep.subr.mxu0 0.0
    %240 = vmatpush1.msra.mxu0 0.0
    %241 = vmatprep.subr.mxu0 0.0
    %242 = vmatpush1.msra.mxu0 0.0
    %243 = vmatprep.subr.mxu0 0.0
    %244 = vmatpush1.msra.mxu0 0.0
    %245 = vmatprep.subr.mxu0 0.0
    %246 = vmatpush1.msra.mxu0 0.0
    %247 = vmatprep.subr.mxu0 0.0
    %248 = vmatpush1.msra.mxu0 0.0
    %249 = vmatprep.subr.mxu0 0.0
    %250 = vmatpush1.msra.mxu0 0.0
    %251 = vmatprep.subr.mxu0 0.0
    %252 = vmatpush1.msra.mxu0 0.0
    %253 = vmatprep.subr.mxu0 0.0
    %254 = vmatpush1.msra.mxu0 0.0
    %255 = vmatprep.subr.mxu0 0.0
    %256 = vmatpush1.msra.mxu0 0.0
    %257 = vmatprep.subr.mxu0 0.0
    %258 = vmatpush1.msra.mxu0 0.0
    %259 = vmatprep.subr.mxu0 0.0
    %260 = vmatpush1.msra.mxu0 0.0
    %261 = vmatprep.subr.mxu0 0.0
    %262 = vmatpush1.msra.mxu0 0.0
    %263 = vmatprep.subr.mxu0 0.0
    %264 = vmatpush1.msra.mxu0 0.0
    %265 = vmatprep.subr.mxu0 0.0
    %266 = vmatpush1.msra.mxu0 0.0
    %267 = vmatprep.mubr.f32.mxu0 0.0
    %268 = vmatmul.mubr.f32.gmra.mrb[0].mxu0 %v198
    %v269 = vpop.f32.mrb[0].mxu0
    %v270 = vadd.f32 %v194, %v269
    %v271 = vpop.f32.mrb[0].mxu0
    %272 = vmatprep.mubr.f32.mxu0 0.0
    %273 = vmatmul.mubr.f32.gmra.mrb[0].mxu0 %v201
    %v274 = vpop.f32.mrb[0].mxu0
    %v275 = vadd.f32 %v194, %v274
    %v276 = vpop.f32.mrb[0].mxu0
    %277 = vdwg.mxu0
    %v278 = vtanh.pop %v270
    %v279 = vtanh.pop %v275
    %v280 = vadd.f32 %v278, %v176
    %v281 = vadd.f32 %v279, %v177
    %s282 = sld [smem:[#allocation3 + $0x1]]
    %s283 = smul.u32 %s282, 32
    %s284 = scalar_lea.vmem [#allocation7], %s283
    %v285 = vld [vmem:[%s284] sm:$0xff]
    %v286 = vld [vmem:[%s284 + $0x8] sm:$0xff]
    %v287 = vld [vmem:[%s284 + $0x10] sm:$0xff]
    %v288 = vld [vmem:[%s284 + $0x18] sm:$0xff]
    %s289 = scalar_lea.vmem %s3, %s282
    %v290 = vld [vmem:[%s289] sm:$0x1]
    %v292 = vlaneseq
    %v293 = vshrl.u32 %v292, 7
    %v294 = vsub.s32 0, %v293
    %v295 = vrot.slane %v290, %v294
    %297 = vrot.lane.b32.xlu0 %v67, 96
    %v298 = vpop.permute.xlu0 %297
    %299 = vrot.lane.b32.xlu0 %v68, 96
    %v300 = vpop.permute.xlu0 %299
    %v301 = vsel %vm84, %v298, 0
    %v303 = vsel %vm84, %v300, 0
    %305 = vmatprep.subr.mxu0 0.0
    %306 = vmatpush1.msra.mxu0 %v285
    %307 = vmatprep.subr.mxu0 0.0
    %308 = vmatpush1.msra.mxu0 %v286
    %309 = vmatprep.subr.mxu0 0.0
    %310 = vmatpush1.msra.mxu0 %v287
    %311 = vmatprep.subr.mxu0 0.0
    %312 = vmatpush1.msra.mxu0 %v288
    %313 = vmatprep.subr.mxu0 0.0
    %314 = vmatpush1.msra.mxu0 0.0
    %315 = vmatprep.subr.mxu0 0.0
    %316 = vmatpush1.msra.mxu0 0.0
    %317 = vmatprep.subr.mxu0 0.0
    %318 = vmatpush1.msra.mxu0 0.0
    %319 = vmatprep.subr.mxu0 0.0
    %320 = vmatpush1.msra.mxu0 0.0
    %321 = vmatprep.subr.mxu0 0.0
    %322 = vmatpush1.msra.mxu0 0.0
    %323 = vmatprep.subr.mxu0 0.0
    %324 = vmatpush1.msra.mxu0 0.0
    %325 = vmatprep.subr.mxu0 0.0
    %326 = vmatpush1.msra.mxu0 0.0
    %327 = vmatprep.subr.mxu0 0.0
    %328 = vmatpush1.msra.mxu0 0.0
    %329 = vmatprep.subr.mxu0 0.0
    %330 = vmatpush1.msra.mxu0 0.0
    %331 = vmatprep.subr.mxu0 0.0
    %332 = vmatpush1.msra.mxu0 0.0
    %333 = vmatprep.subr.mxu0 0.0
    %334 = vmatpush1.msra.mxu0 0.0
    %335 = vmatprep.subr.mxu0 0.0
    %336 = vmatpush1.msra.mxu0 0.0
    %337 = vmatprep.subr.mxu0 0.0
    %338 = vmatpush1.msra.mxu0 0.0
    %339 = vmatprep.subr.mxu0 0.0
    %340 = vmatpush1.msra.mxu0 0.0
    %341 = vmatprep.subr.mxu0 0.0
    %342 = vmatpush1.msra.mxu0 0.0
    %343 = vmatprep.subr.mxu0 0.0
    %344 = vmatpush1.msra.mxu0 0.0
    %345 = vmatprep.subr.mxu0 0.0
    %346 = vmatpush1.msra.mxu0 0.0
    %347 = vmatprep.subr.mxu0 0.0
    %348 = vmatpush1.msra.mxu0 0.0
    %349 = vmatprep.subr.mxu0 0.0
    %350 = vmatpush1.msra.mxu0 0.0
    %351 = vmatprep.subr.mxu0 0.0
    %352 = vmatpush1.msra.mxu0 0.0
    %353 = vmatprep.subr.mxu0 0.0
    %354 = vmatpush1.msra.mxu0 0.0
    %355 = vmatprep.subr.mxu0 0.0
    %356 = vmatpush1.msra.mxu0 0.0
    %357 = vmatprep.subr.mxu0 0.0
    %358 = vmatpush1.msra.mxu0 0.0
    %359 = vmatprep.subr.mxu0 0.0
    %360 = vmatpush1.msra.mxu0 0.0
    %361 = vmatprep.subr.mxu0 0.0
    %362 = vmatpush1.msra.mxu0 0.0
    %363 = vmatprep.subr.mxu0 0.0
    %364 = vmatpush1.msra.mxu0 0.0
    %365 = vmatprep.subr.mxu0 0.0
    %366 = vmatpush1.msra.mxu0 0.0
    %367 = vmatprep.subr.mxu0 0.0
    %368 = vmatpush1.msra.mxu0 0.0
    %369 = vmatprep.mubr.f32.mxu0 0.0
    %370 = vmatmul.mubr.f32.gmra.mrb[0].mxu0 %v301
    %v371 = vpop.f32.mrb[0].mxu0
    %v372 = vadd.f32 %v295, %v371
    %v373 = vpop.f32.mrb[0].mxu0
    %374 = vmatprep.mubr.f32.mxu0 0.0
    %375 = vmatmul.mubr.f32.gmra.mrb[0].mxu0 %v303
    %v376 = vpop.f32.mrb[0].mxu0
    %v377 = vadd.f32 %v295, %v376
    %v378 = vpop.f32.mrb[0].mxu0
    %379 = vdwg.mxu0
    %v380 = vtanh.pop %v372
    %v381 = vtanh.pop %v377
    %v384 = vsel %vm84, %v298, %v67
    %v385 = vsel %vm84, %v300, %v68
    %v386 = vadd.f32 %v380, %v384
    %v387 = vadd.f32 %v381, %v385
    %s388 = smul.u32 %s282, 64
    %s389 = scalar_lea.vmem [#allocation9], %s388
    %v390 = vld [vmem:[%s389] sm:$0xff]
    %v391 = vld [vmem:[%s389 + $0x8] sm:$0xff]
    %v392 = vld [vmem:[%s389 + $0x10] sm:$0xff]
    %v393 = vld [vmem:[%s389 + $0x18] sm:$0xff]
    %v394 = vld [vmem:[%s389 + $0x20] sm:$0xff]
    %v395 = vld [vmem:[%s389 + $0x28] sm:$0xff]
    %v396 = vld [vmem:[%s389 + $0x30] sm:$0xff]
    %v397 = vld [vmem:[%s389 + $0x38] sm:$0xff]
    %s398 = scalar_lea.vmem %s5, %s282
    %v399 = vld [vmem:[%s398] sm:$0x1]
    %v401 = vlaneseq
    %v402 = vshrl.u32 %v401, 7
    %v403 = vsub.s32 0, %v402
    %v404 = vrot.slane %v399, %v403
    %v407 = vsel %vm196, %v386, 0
    %v410 = vsel %vm196, %v387, 0
    %412 = vmatprep.subr.mxu0 0.0
    %413 = vmatpush1.msra.mxu0 %v390
    %414 = vmatprep.subr.mxu0 0.0
    %415 = vmatpush1.msra.mxu0 %v391
    %416 = vmatprep.subr.mxu0 0.0
    %417 = vmatpush1.msra.mxu0 %v392
    %418 = vmatprep.subr.mxu0 0.0
    %419 = vmatpush1.msra.mxu0 %v393
    %420 = vmatprep.subr.mxu0 0.0
    %421 = vmatpush1.msra.mxu0 %v394
    %422 = vmatprep.subr.mxu0 0.0
    %423 = vmatpush1.msra.mxu0 %v395
    %424 = vmatprep.subr.mxu0 0.0
    %425 = vmatpush1.msra.mxu0 %v396
    %426 = vmatprep.subr.mxu0 0.0
    %427 = vmatpush1.msra.mxu0 %v397
    %428 = vmatprep.subr.mxu0 0.0
    %429 = vmatpush1.msra.mxu0 0.0
    %430 = vmatprep.subr.mxu0 0.0
    %431 = vmatpush1.msra.mxu0 0.0
    %432 = vmatprep.subr.mxu0 0.0
    %433 = vmatpush1.msra.mxu0 0.0
    %434 = vmatprep.subr.mxu0 0.0
    %435 = vmatpush1.msra.mxu0 0.0
    %436 = vmatprep.subr.mxu0 0.0
    %437 = vmatpush1.msra.mxu0 0.0
    %438 = vmatprep.subr.mxu0 0.0
    %439 = vmatpush1.msra.mxu0 0.0
    %440 = vmatprep.subr.mxu0 0.0
    %441 = vmatpush1.msra.mxu0 0.0
    %442 = vmatprep.subr.mxu0 0.0
    %443 = vmatpush1.msra.mxu0 0.0
    %444 = vmatprep.subr.mxu0 0.0
    %445 = vmatpush1.msra.mxu0 0.0
    %446 = vmatprep.subr.mxu0 0.0
    %447 = vmatpush1.msra.mxu0 0.0
    %448 = vmatprep.subr.mxu0 0.0
    %449 = vmatpush1.msra.mxu0 0.0
    %450 = vmatprep.subr.mxu0 0.0
    %451 = vmatpush1.msra.mxu0 0.0
    %452 = vmatprep.subr.mxu0 0.0
    %453 = vmatpush1.msra.mxu0 0.0
    %454 = vmatprep.subr.mxu0 0.0
    %455 = vmatpush1.msra.mxu0 0.0
    %456 = vmatprep.subr.mxu0 0.0
    %457 = vmatpush1.msra.mxu0 0.0
    %458 = vmatprep.subr.mxu0 0.0
    %459 = vmatpush1.msra.mxu0 0.0
    %460 = vmatprep.subr.mxu0 0.0
    %461 = vmatpush1.msra.mxu0 0.0
    %462 = vmatprep.subr.mxu0 0.0
    %463 = vmatpush1.msra.mxu0 0.0
    %464 = vmatprep.subr.mxu0 0.0
    %465 = vmatpush1.msra.mxu0 0.0
    %466 = vmatprep.subr.mxu0 0.0
    %467 = vmatpush1.msra.mxu0 0.0
    %468 = vmatprep.subr.mxu0 0.0
    %469 = vmatpush1.msra.mxu0 0.0
    %470 = vmatprep.subr.mxu0 0.0
    %471 = vmatpush1.msra.mxu0 0.0
    %472 = vmatprep.subr.mxu0 0.0
    %473 = vmatpush1.msra.mxu0 0.0
    %474 = vmatprep.subr.mxu0 0.0
    %475 = vmatpush1.msra.mxu0 0.0
    %476 = vmatprep.mubr.f32.mxu0 0.0
    %477 = vmatmul.mubr.f32.gmra.mrb[0].mxu0 %v407
    %v478 = vpop.f32.mrb[0].mxu0
    %v479 = vadd.f32 %v404, %v478
    %v480 = vpop.f32.mrb[0].mxu0
    %481 = vmatprep.mubr.f32.mxu0 0.0
    %482 = vmatmul.mubr.f32.gmra.mrb[0].mxu0 %v410
    %v483 = vpop.f32.mrb[0].mxu0
    %v484 = vadd.f32 %v404, %v483
    %v485 = vpop.f32.mrb[0].mxu0
    %486 = vdwg.mxu0
    %v487 = vtanh.pop %v479
    %v488 = vtanh.pop %v484
    %v489 = vadd.f32 %v487, %v386
    %v490 = vadd.f32 %v488, %v387
    %493 = vrot.lane.b32.xlu0 %v489, 64
    %v494 = vpop.permute.xlu0 %493
    %495 = vrot.lane.b32.xlu0 %v490, 64
    %v496 = vpop.permute.xlu0 %495
    %v499 = vsel %vm196, %v280, %v494
    %v500 = vsel %vm196, %v281, %v496
    %501 = vst [vmem:[#allocation10] sm:$0xff] %v499
    %502 = vst [vmem:[#allocation10 + $0x8] sm:$0xff] %v500
    // Predicated region
    $region34: #{tpu_custom_call.1} parent=1 // pred_check
      _
    $region35: #{tpu_custom_call.1} parent=1 // pred_check_branch
      %504 = sbr.rel (0) target = $region37
    $region36: #{tpu_custom_call.1} parent=1 // pred_region
      %s506 = ssub.s32 256, 256
      %507 = vsyncadd [#allocation6], %s506
      %s508 = sshll.u32 [#allocation10], 4
      %s509 = int_to_ptr.vmem [resolvable:$true] %s508
      %514 = dma.vmem_to_hbm [thread:$0]  %s509, 256, %s6, [#allocation6], 128, 128, 8
    $region37: #{tpu_custom_call.1} parent=1 // pred_fallthru
      _
    // Predicated region
    $region38: #{tpu_custom_call.1} parent=1 // pred_check
      _
    $region39: #{tpu_custom_call.1} parent=1 // pred_check_branch
      %516 = sbr.rel (0) target = $region41
    $region40: #{tpu_custom_call.1} parent=1 // pred_region
      %517 = dma.done [#allocation6], 256
    $region41: #{tpu_custom_call.1} parent=1 // pred_fallthru
      _
    %518 = vsyncpa [#allocation5], 1
    %519 = vsyncpa [#allocation8], 1
    %520 = vsyncpa [#allocation6], 1

</llo_original>
